<compile_context>
chip_gen: v5e
topology: v5e:2x2
jax: 0.10.0
libtpu: 0.0.40
codegen_flags: <defaults>
</compile_context>

<pallas_src>
import functools
import math

import jax
import jax.numpy as jnp
from jax.experimental import pallas as pl
from jax.experimental.pallas import tpu as pltpu


def _pairwise_kernel(pos_ref, nbr_ref, qidx_ref, mask_ref, off_ref, cell_ref,
                     out_ref, *, n_chunks, chunk):
    """One (batch b, atom-tile t) grid step.

    pos_ref  : [3, N_tab]   plane-major atom-position table (resident per batch)
    nbr_ref  : [1, TP]      neighbor atom index per pair (TP = TN * M)
    qidx_ref : [1, TP]      query atom index per pair
    mask_ref : [1, TP]      neighbor mask (0/1)
    off_ref  : [3, 1, TP]   plane-major cell offsets
    cell_ref : [B, 9]       row-major flattened cells, in SMEM
    out_ref  : [1, TP]      masked pairwise distances
    """
    b = pl.program_id(0)

    nbr = nbr_ref[...]                    # [1, TP] int32
    qid = qidx_ref[...]                   # [1, TP] int32
    tp = nbr.shape[1]

    # ---- gather (pos_j - pos_i) via K-blocked signed one-hot on the MXU ----
    #   A[k, p]    = (nbr[p] == k) - (qidx[p] == k)
    #   dvec[d, p] = sum_k pos[d, k] * A[k, p] = pos[d, nbr[p]] - pos[d, qidx[p]]
    kk = jax.lax.broadcasted_iota(jnp.int32, (chunk, tp), 0)
    acc = jnp.zeros((3, tp), jnp.float32)

    if n_chunks <= 8:
        # Small number of chunks: static unrolled loop (static slices).
        for c in range(n_chunks):
            k_glob = kk + (c * chunk)
            a = ((k_glob == nbr).astype(jnp.float32)
                 - (k_glob == qid).astype(jnp.float32))            # [C, TP]
            pos_c = pos_ref[:, c * chunk:(c + 1) * chunk]          # [3, C]
            acc = acc + jnp.dot(pos_c, a, preferred_element_type=jnp.float32)
    else:
        def body(c, carry):
            c0 = pl.multiple_of(c * chunk, chunk)
            k_glob = kk + c0
            a = ((k_glob == nbr).astype(jnp.float32)
                 - (k_glob == qid).astype(jnp.float32))            # [C, TP]
            pos_c = pos_ref[:, pl.ds(c0, chunk)]                   # [3, C]
            return carry + jnp.dot(pos_c, a, preferred_element_type=jnp.float32)
        acc = jax.lax.fori_loop(0, n_chunks, body, acc)

    # ---- periodic-image shift on the VPU: dvec += cell_offsets @ cell ------
    off = off_ref[...]                    # [3, 1, TP]
    ox, oy, oz = off[0], off[1], off[2]   # each [1, TP]
    c00 = cell_ref[b, 0]; c01 = cell_ref[b, 1]; c02 = cell_ref[b, 2]
    c10 = cell_ref[b, 3]; c11 = cell_ref[b, 4]; c12 = cell_ref[b, 5]
    c20 = cell_ref[b, 6]; c21 = cell_ref[b, 7]; c22 = cell_ref[b, 8]

    dx = acc[0:1, :] + ox * c00 + oy * c10 + oz * c20
    dy = acc[1:2, :] + ox * c01 + oy * c11 + oz * c21
    dz = acc[2:3, :] + ox * c02 + oy * c12 + oz * c22

    dist = jnp.sqrt(dx * dx + dy * dy + dz * dz)                   # [1, TP]
    out_ref[...] = jnp.where(mask_ref[...] != 0.0, dist, jnp.zeros_like(dist))


def _round_up(x, m):
    return ((x + m - 1) // m) * m


def pairwise_representation(positions, neighbors, neighbor_mask, cell, cell_offsets):
    """Pallas wrapper: grid over (batch, atom tiles), plane-major / lane-dense layout."""
    B, N, D = positions.shape
    assert D == 3
    M = neighbors.shape[2]
    f32 = jnp.float32

    # ---- tiling over query atoms: TP = TN * M pairs per grid step ----------
    P = N * M
    if P <= 4096:
        TN = N                                   # single atom tile per batch
    else:
        tn_step = 128 // math.gcd(M, 128)        # makes TN * M a multiple of 128
        TN = max(1, 2048 // M)                   # ~2K pairs / step: fits v5e/v7x
        TN = _round_up(TN, tn_step)
    NT = -(-N // TN)
    N_pad = NT * TN
    TP = TN * M

    # ---- gather-table chunking along the atom axis --------------------------
    C = N_pad if N_pad <= 128 else 128
    N_tab = _round_up(N_pad, C)
    NC = N_tab // C

    def pad_atoms(x, target):
        pad = target - x.shape[1]
        if pad == 0:
            return x
        widths = [(0, 0)] * x.ndim
        widths[1] = (0, pad)
        return jnp.pad(x, widths)

    # Plane-major position table [B, 3, N_tab] (zero padded; padded atoms never matched).
    pos_pl = jnp.transpose(pad_atoms(positions.astype(f32), N_tab), (0, 2, 1))
    # Pair-flattened, lane-dense per-pair arrays.
    nbr_f = pad_atoms(neighbors.astype(jnp.int32), N_pad).reshape(B, NT, TP)
    msk_f = pad_atoms(neighbor_mask.astype(f32), N_pad).reshape(B, NT, TP)
    off_f = jnp.transpose(pad_atoms(cell_offsets.astype(f32), N_pad),
                          (0, 3, 1, 2)).reshape(B, 3, NT, TP)
    qidx = jnp.repeat(jnp.arange(N_pad, dtype=jnp.int32), M).reshape(NT, TP)
    cell_f = cell.astype(f32).reshape(B, 9)

    kernel = functools.partial(_pairwise_kernel, n_chunks=NC, chunk=C)

    out = pl.pallas_call(
        kernel,
        out_shape=jax.ShapeDtypeStruct((B, NT, TP), f32),
        grid=(B, NT),
        in_specs=[
            pl.BlockSpec((None, 3, N_tab), lambda b, t: (b, 0, 0)),     # positions (planes)
            pl.BlockSpec((None, 1, TP), lambda b, t: (b, t, 0)),        # neighbors
            pl.BlockSpec((1, TP), lambda b, t: (t, 0)),                 # query indices
            pl.BlockSpec((None, 1, TP), lambda b, t: (b, t, 0)),        # neighbor mask
            pl.BlockSpec((None, 3, 1, TP), lambda b, t: (b, 0, t, 0)),  # cell offsets (planes)
            pl.BlockSpec(memory_space=pltpu.MemorySpace.SMEM),          # cell [B, 9] -> SMEM
        ],
        out_specs=pl.BlockSpec((None, 1, TP), lambda b, t: (b, t, 0)),
        compiler_params=pltpu.CompilerParams(
            dimension_semantics=("parallel", "parallel"),
            vmem_limit_bytes=64 * 1024 * 1024,
        ),
    )(pos_pl, nbr_f, qidx, msk_f, off_f, cell_f)

    return out.reshape(B, N_pad, M)[:, :N, :]


def _reference(positions, neighbors, neighbor_mask, cell, cell_offsets):
    """Pure-JAX reference mirroring schnetpack's atom_distances."""
    def one(pos, nbr, mask, c, off):
        pos_j = pos[nbr]                                       # [N, M, 3]
        dvec = pos_j - pos[:, None, :] + jnp.einsum("nmk,kd->nmd", off, c)
        d = jnp.sqrt(jnp.sum(dvec * dvec, axis=-1))
        return jnp.where(mask != 0, d, 0.0)
    return jax.vmap(one)(positions, neighbors, neighbor_mask, cell, cell_offsets)


if __name__ == "__main__":
    # Small synthetic system: batch=2, 8 atoms, 8 neighbor slots each.
    B, N, M = 2, 8, 8
    key = jax.random.PRNGKey(0)
    k_pos, k_nbr, k_msk, k_off = jax.random.split(key, 4)

    positions = jax.random.normal(k_pos, (B, N, 3), dtype=jnp.float32) * 2.0
    neighbors = jax.random.randint(k_nbr, (B, N, M), 0, N, dtype=jnp.int32)
    neighbor_mask = jax.random.bernoulli(k_msk, 0.8, (B, N, M)).astype(jnp.float32)
    cell = jnp.tile(jnp.eye(3, dtype=jnp.float32)[None] * 5.0, (B, 1, 1))
    cell_offsets = jax.random.randint(k_off, (B, N, M, 3), -1, 2).astype(jnp.float32)

    out = pairwise_representation(positions, neighbors, neighbor_mask, cell, cell_offsets)
    out = jax.block_until_ready(out)

    ref = _reference(positions, neighbors, neighbor_mask, cell, cell_offsets)
    assert out.shape == (B, N, M) and out.dtype == jnp.float32
    assert jnp.allclose(out, ref, atol=1e-5, rtol=1e-5), "mismatch vs reference"

    print("KERNEL_OK")
</pallas_src>

<mosaic_0001>
module attributes {stable_mosaic.version = 11 : i64} {
  func.func @_pairwise_kernel(%arg0: i32, %arg1: i32, %arg2: memref<1x3x8xf32, #tpu.memory_space<vmem>>, %arg3: memref<1x1x64xi32, #tpu.memory_space<vmem>>, %arg4: memref<1x64xi32, #tpu.memory_space<vmem>>, %arg5: memref<1x1x64xf32, #tpu.memory_space<vmem>>, %arg6: memref<1x3x1x64xf32, #tpu.memory_space<vmem>>, %arg7: memref<2x9xf32, #tpu.memory_space<smem>>, %arg8: memref<1x1x64xf32, #tpu.memory_space<vmem>>) attributes {dimension_semantics = [#tpu.dimension_semantics<parallel>, #tpu.dimension_semantics<parallel>], iteration_bounds = array<i64: 2, 1>, scalar_prefetch = 0 : i64, scratch_operands = 0 : i64, tpu.core_type = #tpu.core_type<tc>, window_params = [{transform_indices = @transform_0, window_bounds = array<i64: 1, 3, 8>}, {transform_indices = @transform_1, window_bounds = array<i64: 1, 1, 64>}, {transform_indices = @transform_2, window_bounds = array<i64: 1, 64>}, {transform_indices = @transform_3, window_bounds = array<i64: 1, 1, 64>}, {transform_indices = @transform_4, window_bounds = array<i64: 1, 3, 1, 64>}, {transform_indices = @transform_5, window_bounds = array<i64: 2, 9>}, {transform_indices = @transform_6, window_bounds = array<i64: 1, 1, 64>}]} {
    %c0 = arith.constant 0 : index
    %c0_0 = arith.constant 0 : index
    %c0_1 = arith.constant 0 : index
    %0 = vector.load %arg3[%c0, %c0_0, %c0_1] : memref<1x1x64xi32, #tpu.memory_space<vmem>>, vector<1x1x64xi32>
    %1 = vector.shape_cast %0 : vector<1x1x64xi32> to vector<1x64xi32>
    %c0_2 = arith.constant 0 : index
    %c0_3 = arith.constant 0 : index
    %2 = vector.load %arg4[%c0_2, %c0_3] : memref<1x64xi32, #tpu.memory_space<vmem>>, vector<1x64xi32>
    %3 = tpu.iota {dimensions = array<i32: 0>} : vector<8x64xi32>
    %cst = arith.constant 0.000000e+00 : f32
    %4 = vector.broadcast %cst : f32 to vector<3x64xf32>
    %c0_i32 = arith.constant 0 : i32
    %5 = vector.broadcast %c0_i32 : i32 to vector<8x64xi32>
    %6 = arith.addi %3, %5 : vector<8x64xi32>
    %7 = vector.broadcast %1 : vector<1x64xi32> to vector<8x64xi32>
    %8 = arith.cmpi eq, %6, %7 : vector<8x64xi32>
    %9 = arith.extui %8 : vector<8x64xi1> to vector<8x64xi32>
    %10 = arith.sitofp %9 : vector<8x64xi32> to vector<8x64xf32>
    %11 = vector.broadcast %2 : vector<1x64xi32> to vector<8x64xi32>
    %12 = arith.cmpi eq, %6, %11 : vector<8x64xi32>
    %13 = arith.extui %12 : vector<8x64xi1> to vector<8x64xi32>
    %14 = arith.sitofp %13 : vector<8x64xi32> to vector<8x64xf32>
    %15 = arith.subf %10, %14 : vector<8x64xf32>
    %c0_4 = arith.constant 0 : index
    %c0_5 = arith.constant 0 : index
    %c0_6 = arith.constant 0 : index
    %16 = vector.load %arg2[%c0_4, %c0_5, %c0_6] : memref<1x3x8xf32, #tpu.memory_space<vmem>>, vector<1x3x8xf32>
    %17 = vector.shape_cast %16 : vector<1x3x8xf32> to vector<3x8xf32>
    %cst_7 = arith.constant dense<0.000000e+00> : vector<3x64xf32>
    %18 = tpu.matmul %17, %15, %cst_7 {dimension_numbers = #tpu.dot_dimension_numbers<[1], [0], [0], [1], [0, 0, 1, 1], [], []>} : vector<3x8xf32>, vector<8x64xf32>, vector<3x64xf32> -> vector<3x64xf32>
    %19 = arith.addf %4, %18 : vector<3x64xf32>
    %c0_8 = arith.constant 0 : index
    %c0_9 = arith.constant 0 : index
    %c0_10 = arith.constant 0 : index
    %c0_11 = arith.constant 0 : index
    %20 = vector.load %arg6[%c0_8, %c0_9, %c0_10, %c0_11] : memref<1x3x1x64xf32, #tpu.memory_space<vmem>>, vector<1x3x1x64xf32>
    %21 = vector.shape_cast %20 : vector<1x3x1x64xf32> to vector<3x1x64xf32>
    %22 = vector.extract_strided_slice %21 {offsets = [0, 0, 0], sizes = [1, 1, 64], strides = [1, 1, 1]} : vector<3x1x64xf32> to vector<1x1x64xf32>
    %23 = vector.shape_cast %22 : vector<1x1x64xf32> to vector<1x64xf32>
    %24 = vector.extract_strided_slice %21 {offsets = [1, 0, 0], sizes = [1, 1, 64], strides = [1, 1, 1]} : vector<3x1x64xf32> to vector<1x1x64xf32>
    %25 = vector.shape_cast %24 : vector<1x1x64xf32> to vector<1x64xf32>
    %26 = vector.extract_strided_slice %21 {offsets = [2, 0, 0], sizes = [1, 1, 64], strides = [1, 1, 1]} : vector<3x1x64xf32> to vector<1x1x64xf32>
    %27 = vector.shape_cast %26 : vector<1x1x64xf32> to vector<1x64xf32>
    %28 = arith.index_cast %arg0 : i32 to index
    %c0_12 = arith.constant 0 : index
    %29 = memref.load %arg7[%28, %c0_12] : memref<2x9xf32, #tpu.memory_space<smem>>
    %30 = arith.index_cast %arg0 : i32 to index
    %c1 = arith.constant 1 : index
    %31 = memref.load %arg7[%30, %c1] : memref<2x9xf32, #tpu.memory_space<smem>>
    %32 = arith.index_cast %arg0 : i32 to index
    %c2 = arith.constant 2 : index
    %33 = memref.load %arg7[%32, %c2] : memref<2x9xf32, #tpu.memory_space<smem>>
    %34 = arith.index_cast %arg0 : i32 to index
    %c3 = arith.constant 3 : index
    %35 = memref.load %arg7[%34, %c3] : memref<2x9xf32, #tpu.memory_space<smem>>
    %36 = arith.index_cast %arg0 : i32 to index
    %c4 = arith.constant 4 : index
    %37 = memref.load %arg7[%36, %c4] : memref<2x9xf32, #tpu.memory_space<smem>>
    %38 = arith.index_cast %arg0 : i32 to index
    %c5 = arith.constant 5 : index
    %39 = memref.load %arg7[%38, %c5] : memref<2x9xf32, #tpu.memory_space<smem>>
    %40 = arith.index_cast %arg0 : i32 to index
    %c6 = arith.constant 6 : index
    %41 = memref.load %arg7[%40, %c6] : memref<2x9xf32, #tpu.memory_space<smem>>
    %42 = arith.index_cast %arg0 : i32 to index
    %c7 = arith.constant 7 : index
    %43 = memref.load %arg7[%42, %c7] : memref<2x9xf32, #tpu.memory_space<smem>>
    %44 = arith.index_cast %arg0 : i32 to index
    %c8 = arith.constant 8 : index
    %45 = memref.load %arg7[%44, %c8] : memref<2x9xf32, #tpu.memory_space<smem>>
    %46 = vector.extract_strided_slice %19 {offsets = [0, 0], sizes = [1, 64], strides = [1, 1]} : vector<3x64xf32> to vector<1x64xf32>
    %47 = vector.broadcast %29 : f32 to vector<1x64xf32>
    %48 = arith.mulf %23, %47 : vector<1x64xf32>
    %49 = arith.addf %46, %48 : vector<1x64xf32>
    %50 = vector.broadcast %35 : f32 to vector<1x64xf32>
    %51 = arith.mulf %25, %50 : vector<1x64xf32>
    %52 = arith.addf %49, %51 : vector<1x64xf32>
    %53 = vector.broadcast %41 : f32 to vector<1x64xf32>
    %54 = arith.mulf %27, %53 : vector<1x64xf32>
    %55 = arith.addf %52, %54 : vector<1x64xf32>
    %56 = vector.extract_strided_slice %19 {offsets = [1, 0], sizes = [1, 64], strides = [1, 1]} : vector<3x64xf32> to vector<1x64xf32>
    %57 = vector.broadcast %31 : f32 to vector<1x64xf32>
    %58 = arith.mulf %23, %57 : vector<1x64xf32>
    %59 = arith.addf %56, %58 : vector<1x64xf32>
    %60 = vector.broadcast %37 : f32 to vector<1x64xf32>
    %61 = arith.mulf %25, %60 : vector<1x64xf32>
    %62 = arith.addf %59, %61 : vector<1x64xf32>
    %63 = vector.broadcast %43 : f32 to vector<1x64xf32>
    %64 = arith.mulf %27, %63 : vector<1x64xf32>
    %65 = arith.addf %62, %64 : vector<1x64xf32>
    %66 = vector.extract_strided_slice %19 {offsets = [2, 0], sizes = [1, 64], strides = [1, 1]} : vector<3x64xf32> to vector<1x64xf32>
    %67 = vector.broadcast %33 : f32 to vector<1x64xf32>
    %68 = arith.mulf %23, %67 : vector<1x64xf32>
    %69 = arith.addf %66, %68 : vector<1x64xf32>
    %70 = vector.broadcast %39 : f32 to vector<1x64xf32>
    %71 = arith.mulf %25, %70 : vector<1x64xf32>
    %72 = arith.addf %69, %71 : vector<1x64xf32>
    %73 = vector.broadcast %45 : f32 to vector<1x64xf32>
    %74 = arith.mulf %27, %73 : vector<1x64xf32>
    %75 = arith.addf %72, %74 : vector<1x64xf32>
    %76 = arith.mulf %55, %55 : vector<1x64xf32>
    %77 = arith.mulf %65, %65 : vector<1x64xf32>
    %78 = arith.addf %76, %77 : vector<1x64xf32>
    %79 = arith.mulf %75, %75 : vector<1x64xf32>
    %80 = arith.addf %78, %79 : vector<1x64xf32>
    %81 = math.sqrt %80 : vector<1x64xf32>
    %c0_13 = arith.constant 0 : index
    %c0_14 = arith.constant 0 : index
    %c0_15 = arith.constant 0 : index
    %82 = vector.load %arg5[%c0_13, %c0_14, %c0_15] : memref<1x1x64xf32, #tpu.memory_space<vmem>>, vector<1x1x64xf32>
    %83 = vector.shape_cast %82 : vector<1x1x64xf32> to vector<1x64xf32>
    %cst_16 = arith.constant 0.000000e+00 : f32
    %84 = vector.broadcast %cst_16 : f32 to vector<1x64xf32>
    %85 = arith.cmpf one, %83, %84 : vector<1x64xf32>
    %cst_17 = arith.constant 0.000000e+00 : f32
    %86 = vector.broadcast %cst_17 : f32 to vector<1x64xf32>
    %87 = arith.select %85, %81, %86 : vector<1x64xi1>, vector<1x64xf32>
    %c0_18 = arith.constant 0 : index
    %c0_19 = arith.constant 0 : index
    %c0_20 = arith.constant 0 : index
    %88 = vector.load %arg8[%c0_18, %c0_19, %c0_20] : memref<1x1x64xf32, #tpu.memory_space<vmem>>, vector<1x1x64xf32>
    %89 = vector.shape_cast %88 : vector<1x1x64xf32> to vector<1x64xf32>
    %90 = vector.shape_cast %87 : vector<1x64xf32> to vector<1x1x64xf32>
    tpu.vector_store %arg8[%c0_18, %c0_19, %c0_20], %90 {strides = array<i32>} : memref<1x1x64xf32, #tpu.memory_space<vmem>>, vector<1x1x64xf32>,
    return
  }
  func.func @transform_0(%arg0: i32, %arg1: i32) -> (i32, i32, i32) {
    %c0_i32 = arith.constant 0 : i32
    %c0_i32_0 = arith.constant 0 : i32
    %c0_i32_1 = arith.constant 0 : i32
    return %arg0, %c0_i32, %c0_i32_0 : i32, i32, i32
  }
  func.func @transform_1(%arg0: i32, %arg1: i32) -> (i32, i32, i32) {
    %c0_i32 = arith.constant 0 : i32
    %c0_i32_0 = arith.constant 0 : i32
    return %arg0, %arg1, %c0_i32 : i32, i32, i32
  }
  func.func @transform_2(%arg0: i32, %arg1: i32) -> (i32, i32) {
    %c0_i32 = arith.constant 0 : i32
    %c0_i32_0 = arith.constant 0 : i32
    return %arg1, %c0_i32 : i32, i32
  }
  func.func @transform_3(%arg0: i32, %arg1: i32) -> (i32, i32, i32) {
    %c0_i32 = arith.constant 0 : i32
    %c0_i32_0 = arith.constant 0 : i32
    return %arg0, %arg1, %c0_i32 : i32, i32, i32
  }
  func.func @transform_4(%arg0: i32, %arg1: i32) -> (i32, i32, i32, i32) {
    %c0_i32 = arith.constant 0 : i32
    %c0_i32_0 = arith.constant 0 : i32
    %c0_i32_1 = arith.constant 0 : i32
    return %arg0, %c0_i32, %arg1, %c0_i32_0 : i32, i32, i32, i32
  }
  func.func @transform_5(%arg0: i32, %arg1: i32) -> (i32, i32) {
    %c0_i32 = arith.constant 0 : i32
    %c0_i32_0 = arith.constant 0 : i32
    %c0_i32_1 = arith.constant 0 : i32
    return %c0_i32, %c0_i32_0 : i32, i32
  }
  func.func @transform_6(%arg0: i32, %arg1: i32) -> (i32, i32, i32) {
    %c0_i32 = arith.constant 0 : i32
    %c0_i32_0 = arith.constant 0 : i32
    return %arg0, %arg1, %c0_i32 : i32, i32, i32
  }
}

</mosaic_0001>

<llo_original>
// kernel: tpu_custom_call.1
$region0: #{tpu_custom_call.1}
  #allocation0 [shape = 'u32[]', space=smem, size = 0x4, offset = 0x4, fixed_abs, tag = 'smem constant byte address 0x4 - core index']
  #allocation1 [shape = 'u32[72,128]{1,0:T(1,128)}', space=vmem, size = 0x9000, scoped, tag = 'internal scratch']
  %s0 = inlined_call_operand.vmem [shape: f32[2,3,8], index: 0, kind: input, shape index: {}]
  %s1 = inlined_call_operand.vmem [shape: s32[2,1,64], index: 1, kind: input, shape index: {}]
  %s2 = inlined_call_operand.vmem [shape: s32[1,64], index: 2, kind: input, shape index: {}]
  %s3 = inlined_call_operand.vmem [shape: f32[2,1,64], index: 3, kind: input, shape index: {}]
  %s4 = inlined_call_operand.vmem [shape: f32[2,3,1,64], index: 4, kind: input, shape index: {}]
  %s5 = inlined_call_operand.vmem [shape: f32[2,9], index: 5, kind: input, shape index: {}]
  %s6 = inlined_call_operand.hbm [shape: f32[2,1,64], index: 6, kind: output, shape index: {}]
  %s7 = sld [smem:[#allocation0]]
  $region61: #{tpu_custom_call.1} parent=0
    _
  %s9 = ssub.s32 1, %s7
  %s10 = scalar_select 0, %s9, %s7
  $region1: #{tpu_custom_call.1} parent=0
    #allocation2 [shape = 'u8[1024]{0}', space=smem, size = 0x400, scoped, tag = 'input window, operand 5, single buffered']
    #allocation3 [shape = 's32[2]{0}', space=sflag, size = 0x8, scoped, tag = 'scoped memory for tpu_custom_call.1']
    #allocation4 [shape = 's32[2]{0}', space=sflag, size = 0x8, scoped, tag = 'scoped memory for tpu_custom_call.1']
    #allocation5 [shape = 'u8[1024]{0}', space=vmem, size = 0x400, scoped, tag = 'output window, operand 0']
    %11 = vsyncpa [#allocation4], 0
    %12 = vsyncpa [#allocation3], 0
    %s13 = scalar_lea.sflag [#allocation3], 1
    %14 = vsyncpa %s13, 0
    loop: start=0, step=1, limit=4
    $region2: #{tpu_custom_call.1} parent=1 // loop_pre_header
      _
    $region3: #{tpu_custom_call.1} parent=1 // loop_header
      %s16 = sphi 0, %s20
      %p17 = scmp.ge.s32.totalorder %s16, 4
      %s23 = sphi 0, %s35
      %s24 = sphi 0, %s31
      %s25 = sphi 0, %s23
      %s26 = sphi 0, %s24
      %s27 = sphi 0, %s25
      %s28 = sphi 0, %s26
      %s38 = sphi 0, %s40
      %s41 = sphi 0, %s38
      %s42 = sphi 0, %s41
      %s58 = sphi 0, %s42
      %s66 = sphi 0, %s68
      %s69 = sphi 0, %s66
      %s70 = sphi 0, %s69
      %s86 = sphi 0, %s70
      %s92 = sphi 0, %s94
      %s95 = sphi 0, %s92
      %s96 = sphi 0, %s95
      %s112 = sphi 0, %s96
      %s120 = sphi 0, %s122
      %s123 = sphi 0, %s120
      %s124 = sphi 0, %s123
      %s140 = sphi 0, %s124
      %s148 = sphi 0, %s150
      %s151 = sphi 0, %s148
      %s152 = sphi 0, %s151
      %s168 = sphi 0, %s152
      %s172 = sphi 0, %s172
      %s174 = sphi 0, %s172
      %s175 = sphi 0, %s174
      %s189 = sphi 0, %s175
      %s197 = sphi 0, %s199
      %s200 = sphi 0, %s197
      %s201 = sphi 0, %s200
      %s217 = sphi 0, %s201
    $region4: #{tpu_custom_call.1} parent=1 // loop_header_branch
      %19 = sbr.rel (%p17) target = $region8
    $region5: #{tpu_custom_call.1} parent=1 // loop_body
      %s21 = ssub.s32 %s16, 1
      %s22 = ssub.s32 %s16, 2
      %s29 = sadd.s32 1, %s24
      %p30 = scmp.ge.s32.totalorder %s29, 1
      %s31 = scalar_select %p30, 0, %s29
      %s32 = sadd.s32 1, %s23
      %s33 = scalar_select %p30, %s32, %s23
      %p34 = scmp.ge.s32.totalorder %s33, 2
      %s35 = scalar_select %p34, 0, %s33
      %s36 = ssub.s32 %s23, %s35
      %p37 = scmp.eq.s32.totalorder %s36, 0
      %s39 = sadd.s32 %s38, 1
      %s40 = scalar_select %p37, %s38, %s39
      %p43 = pneg %p37
      %p44 = scmp.eq.s32.totalorder %s16, 1
      %p45 = por %p43, %p44
      %p46 = scmp.ne.s32.totalorder %s38, %s41
      %p47 = scmp.eq.s32.totalorder %s16, 0
      %p48 = por %p46, %p47
      %p49 = scmp.ne.s32.totalorder %s38, %s41
      %p50 = scmp.eq.s32.totalorder %s21, 1
      %p51 = por %p49, %p50
      %p52 = scmp.ne.s32.totalorder %s41, %s42
      %p53 = scmp.eq.s32.totalorder %s21, 0
      %p54 = por %p52, %p53
      %p55 = scmp.ne.s32.totalorder %s41, %s42
      %p56 = scmp.eq.s32.totalorder %s22, 1
      %p57 = por %p55, %p56
      %p59 = scmp.ne.s32.totalorder %s42, %s58
      %p60 = scmp.eq.s32.totalorder %s22, 0
      %p61 = por %p59, %p60
      %s62 = ssub.s32 %s23, %s35
      %s63 = ssub.s32 %s24, %s31
      %s64 = sor.u32 %s62, %s63
      %p65 = scmp.eq.s32.totalorder %s64, 0
      %s67 = sadd.s32 %s66, 1
      %s68 = scalar_select %p65, %s66, %s67
      %p71 = pneg %p65
      %p72 = scmp.eq.s32.totalorder %s16, 1
      %p73 = por %p71, %p72
      %p74 = scmp.ne.s32.totalorder %s66, %s69
      %p75 = scmp.eq.s32.totalorder %s16, 0
      %p76 = por %p74, %p75
      %p77 = scmp.ne.s32.totalorder %s66, %s69
      %p78 = scmp.eq.s32.totalorder %s21, 1
      %p79 = por %p77, %p78
      %p80 = scmp.ne.s32.totalorder %s69, %s70
      %p81 = scmp.eq.s32.totalorder %s21, 0
      %p82 = por %p80, %p81
      %p83 = scmp.ne.s32.totalorder %s69, %s70
      %p84 = scmp.eq.s32.totalorder %s22, 1
      %p85 = por %p83, %p84
      %p87 = scmp.ne.s32.totalorder %s70, %s86
      %p88 = scmp.eq.s32.totalorder %s22, 0
      %p89 = por %p87, %p88
      %s90 = ssub.s32 %s24, %s31
      %p91 = scmp.eq.s32.totalorder %s90, 0
      %s93 = sadd.s32 %s92, 1
      %s94 = scalar_select %p91, %s92, %s93
      %p97 = pneg %p91
      %p98 = scmp.eq.s32.totalorder %s16, 1
      %p99 = por %p97, %p98
      %p100 = scmp.ne.s32.totalorder %s92, %s95
      %p101 = scmp.eq.s32.totalorder %s16, 0
      %p102 = por %p100, %p101
      %p103 = scmp.ne.s32.totalorder %s92, %s95
      %p104 = scmp.eq.s32.totalorder %s21, 1
      %p105 = por %p103, %p104
      %p106 = scmp.ne.s32.totalorder %s95, %s96
      %p107 = scmp.eq.s32.totalorder %s21, 0
      %p108 = por %p106, %p107
      %p109 = scmp.ne.s32.totalorder %s95, %s96
      %p110 = scmp.eq.s32.totalorder %s22, 1
      %p111 = por %p109, %p110
      %p113 = scmp.ne.s32.totalorder %s96, %s112
      %p114 = scmp.eq.s32.totalorder %s22, 0
      %p115 = por %p113, %p114
      %s116 = ssub.s32 %s23, %s35
      %s117 = ssub.s32 %s24, %s31
      %s118 = sor.u32 %s116, %s117
      %p119 = scmp.eq.s32.totalorder %s118, 0
      %s121 = sadd.s32 %s120, 1
      %s122 = scalar_select %p119, %s120, %s121
      %p125 = pneg %p119
      %p126 = scmp.eq.s32.totalorder %s16, 1
      %p127 = por %p125, %p126
      %p128 = scmp.ne.s32.totalorder %s120, %s123
      %p129 = scmp.eq.s32.totalorder %s16, 0
      %p130 = por %p128, %p129
      %p131 = scmp.ne.s32.totalorder %s120, %s123
      %p132 = scmp.eq.s32.totalorder %s21, 1
      %p133 = por %p131, %p132
      %p134 = scmp.ne.s32.totalorder %s123, %s124
      %p135 = scmp.eq.s32.totalorder %s21, 0
      %p136 = por %p134, %p135
      %p137 = scmp.ne.s32.totalorder %s123, %s124
      %p138 = scmp.eq.s32.totalorder %s22, 1
      %p139 = por %p137, %p138
      %p141 = scmp.ne.s32.totalorder %s124, %s140
      %p142 = scmp.eq.s32.totalorder %s22, 0
      %p143 = por %p141, %p142
      %s144 = ssub.s32 %s23, %s35
      %s145 = ssub.s32 %s24, %s31
      %s146 = sor.u32 %s144, %s145
      %p147 = scmp.eq.s32.totalorder %s146, 0
      %s149 = sadd.s32 %s148, 1
      %s150 = scalar_select %p147, %s148, %s149
      %p153 = pneg %p147
      %p154 = scmp.eq.s32.totalorder %s16, 1
      %p155 = por %p153, %p154
      %p156 = scmp.ne.s32.totalorder %s148, %s151
      %p157 = scmp.eq.s32.totalorder %s16, 0
      %p158 = por %p156, %p157
      %p159 = scmp.ne.s32.totalorder %s148, %s151
      %p160 = scmp.eq.s32.totalorder %s21, 1
      %p161 = por %p159, %p160
      %p162 = scmp.ne.s32.totalorder %s151, %s152
      %p163 = scmp.eq.s32.totalorder %s21, 0
      %p164 = por %p162, %p163
      %p165 = scmp.ne.s32.totalorder %s151, %s152
      %p166 = scmp.eq.s32.totalorder %s22, 1
      %p167 = por %p165, %p166
      %p169 = scmp.ne.s32.totalorder %s152, %s168
      %p170 = scmp.eq.s32.totalorder %s22, 0
      %p171 = por %p169, %p170
      %s173 = sadd.s32 %s172, 1
      %p176 = scmp.eq.s32.totalorder %s16, 1
      %p177 = scmp.ne.s32.totalorder %s172, %s174
      %p178 = scmp.eq.s32.totalorder %s16, 0
      %p179 = por %p177, %p178
      %p180 = scmp.ne.s32.totalorder %s172, %s174
      %p181 = scmp.eq.s32.totalorder %s21, 1
      %p182 = por %p180, %p181
      %p183 = scmp.ne.s32.totalorder %s174, %s175
      %p184 = scmp.eq.s32.totalorder %s21, 0
      %p185 = por %p183, %p184
      %p186 = scmp.ne.s32.totalorder %s174, %s175
      %p187 = scmp.eq.s32.totalorder %s22, 1
      %p188 = por %p186, %p187
      %p190 = scmp.ne.s32.totalorder %s175, %s189
      %p191 = scmp.eq.s32.totalorder %s22, 0
      %p192 = por %p190, %p191
      %s193 = ssub.s32 %s23, %s35
      %s194 = ssub.s32 %s24, %s31
      %s195 = sor.u32 %s193, %s194
      %p196 = scmp.eq.s32.totalorder %s195, 0
      %s198 = sadd.s32 %s197, 1
      %s199 = scalar_select %p196, %s197, %s198
      %p202 = pneg %p196
      %p203 = scmp.eq.s32.totalorder %s16, 1
      %p204 = por %p202, %p203
      %p205 = scmp.ne.s32.totalorder %s197, %s200
      %p206 = scmp.eq.s32.totalorder %s16, 0
      %p207 = por %p205, %p206
      %p208 = scmp.ne.s32.totalorder %s197, %s200
      %p209 = scmp.eq.s32.totalorder %s21, 1
      %p210 = por %p208, %p209
      %p211 = scmp.ne.s32.totalorder %s200, %s201
      %p212 = scmp.eq.s32.totalorder %s21, 0
      %p213 = por %p211, %p212
      %p214 = scmp.ne.s32.totalorder %s200, %s201
      %p215 = scmp.eq.s32.totalorder %s22, 1
      %p216 = por %p214, %p215
      %p218 = scmp.ne.s32.totalorder %s201, %s217
      %p219 = scmp.eq.s32.totalorder %s22, 0
      %p220 = por %p218, %p219
      %p221 = scmp.le.s32.totalorder 1, %s16
      %p222 = scmp.lt.s32.totalorder %s16, 3
      %p223 = pnand %p221, %p222
      %p224 = pneg %p223
      // Predicated region
      $region9: #{tpu_custom_call.1} parent=5 // pred_check
        _
      $region10: #{tpu_custom_call.1} parent=5 // pred_check_branch
        %226 = sbr.rel (%p223) target = $region12
      $region11: #{tpu_custom_call.1} parent=5 // pred_region
        %s227 = ssub.s32 %s16, 1
        // Predicated region
        $region13: #{tpu_custom_call.1} parent=11 // pred_check
          %p228 = pneg %p108
        $region14: #{tpu_custom_call.1} parent=11 // pred_check_branch
          %230 = sbr.rel (%p228) target = $region16
        $region15: #{tpu_custom_call.1} parent=11 // pred_region
          %p231 = scmp.lt.s32.totalorder %s26, 0
          %s232 = scalar_select %p231, %s26, 0
          %s233 = scalar_lea.vmem %s2, %s232
        $region16: #{tpu_custom_call.1} parent=11 // pred_fallthru
          _
        // Predicated region
        $region17: #{tpu_custom_call.1} parent=11 // pred_check
          %p234 = pneg %p185
        $region18: #{tpu_custom_call.1} parent=11 // pred_check_branch
          %236 = sbr.rel (%p234) target = $region20
        $region19: #{tpu_custom_call.1} parent=11 // pred_region
          %238 = vsyncadd [#allocation4], 0
          %s240 = sshll.u32 %s5, 4
          %s241 = int_to_ptr.vmem [resolvable:$true] %s240
          %243 = dma.vmem_to_smem %s241, 32, [#allocation2], [#allocation4]
        $region20: #{tpu_custom_call.1} parent=11 // pred_fallthru
          _
      $region12: #{tpu_custom_call.1} parent=5 // pred_fallthru
        _
      %p244 = scmp.lt.s32.totalorder %s16, 2
      // Predicated region
      $region21: #{tpu_custom_call.1} parent=5 // pred_check
        %p245 = pneg %p244
      $region22: #{tpu_custom_call.1} parent=5 // pred_check_branch
        %247 = sbr.rel (%p245) target = $region24
      $region23: #{tpu_custom_call.1} parent=5 // pred_region
        // Predicated region
        $region25: #{tpu_custom_call.1} parent=23 // pred_check
          %p248 = pneg %p48
        $region26: #{tpu_custom_call.1} parent=23 // pred_check_branch
          %250 = sbr.rel (%p248) target = $region28
        $region27: #{tpu_custom_call.1} parent=23 // pred_region
          %p251 = scmp.lt.s32.totalorder %s23, 1
          %s252 = scalar_select %p251, %s23, 1
          %s253 = smul.addr %s252, 4
          %s254 = scalar_lea.vmem %s0, %s253
        $region28: #{tpu_custom_call.1} parent=23 // pred_fallthru
          _
        // Predicated region
        $region29: #{tpu_custom_call.1} parent=23 // pred_check
          %p255 = pneg %p76
        $region30: #{tpu_custom_call.1} parent=23 // pred_check_branch
          %257 = sbr.rel (%p255) target = $region32
        $region31: #{tpu_custom_call.1} parent=23 // pred_region
          %p258 = scmp.lt.s32.totalorder %s23, 1
          %s259 = scalar_select %p258, %s23, 1
          %p260 = scmp.lt.s32.totalorder %s24, 0
          %s261 = scalar_select %p260, %s24, 0
          %s262 = sadd.s32 %s261, %s259
          %s263 = scalar_lea.vmem %s1, %s262
        $region32: #{tpu_custom_call.1} parent=23 // pred_fallthru
          _
        // Predicated region
        $region33: #{tpu_custom_call.1} parent=23 // pred_check
          %p264 = pneg %p130
        $region34: #{tpu_custom_call.1} parent=23 // pred_check_branch
          %266 = sbr.rel (%p264) target = $region36
        $region35: #{tpu_custom_call.1} parent=23 // pred_region
          %p267 = scmp.lt.s32.totalorder %s23, 1
          %s268 = scalar_select %p267, %s23, 1
          %p269 = scmp.lt.s32.totalorder %s24, 0
          %s270 = scalar_select %p269, %s24, 0
          %s271 = sadd.s32 %s270, %s268
          %s272 = scalar_lea.vmem %s3, %s271
        $region36: #{tpu_custom_call.1} parent=23 // pred_fallthru
          _
        // Predicated region
        $region37: #{tpu_custom_call.1} parent=23 // pred_check
          %p273 = pneg %p158
        $region38: #{tpu_custom_call.1} parent=23 // pred_check_branch
          %275 = sbr.rel (%p273) target = $region40
        $region39: #{tpu_custom_call.1} parent=23 // pred_region
          %p276 = scmp.lt.s32.totalorder %s23, 1
          %s277 = scalar_select %p276, %s23, 1
          %p278 = scmp.lt.s32.totalorder %s24, 0
          %s279 = scalar_select %p278, %s24, 0
          %s280 = smul.addr %s277, 3
          %s281 = sadd.s32 %s279, %s280
          %s282 = scalar_lea.vmem %s4, %s281
        $region40: #{tpu_custom_call.1} parent=23 // pred_fallthru
          _
      $region24: #{tpu_custom_call.1} parent=5 // pred_fallthru
        _
      %p283 = scmp.le.s32.totalorder 1, %s16
      %p284 = scmp.lt.s32.totalorder %s16, 3
      %p285 = pnand %p283, %p284
      %p286 = pneg %p285
      // Predicated region
      $region41: #{tpu_custom_call.1} parent=5 // pred_check
        _
      $region42: #{tpu_custom_call.1} parent=5 // pred_check_branch
        %288 = sbr.rel (%p285) target = $region44
      $region43: #{tpu_custom_call.1} parent=5 // pred_region
        %s289 = ssub.s32 %s16, 1
        // Predicated region
        $region45: #{tpu_custom_call.1} parent=43 // pred_check
          %p290 = pneg %p185
        $region46: #{tpu_custom_call.1} parent=43 // pred_check_branch
          %292 = sbr.rel (%p290) target = $region48
        $region47: #{tpu_custom_call.1} parent=43 // pred_region
          %294 = dma.done [#allocation4], 32
        $region48: #{tpu_custom_call.1} parent=43 // pred_fallthru
          _
        %295 = sfence
        %p296 = scmp.lt.s32.totalorder %s25, 1
        %s297 = scalar_select %p296, %s25, 1
        %s298 = smul.addr %s297, 4
        %s299 = scalar_lea.vmem %s0, %s298
        %p300 = pneg %p54
        %p301 = pneg %p51
        %p302 = scmp.lt.s32.totalorder %s25, 1
        %s303 = scalar_select %p302, %s25, 1
        %p304 = scmp.lt.s32.totalorder %s26, 0
        %s305 = scalar_select %p304, %s26, 0
        %s306 = sadd.s32 %s305, %s303
        %s307 = scalar_lea.vmem %s1, %s306
        %p308 = pneg %p82
        %p309 = pneg %p79
        %p310 = scmp.lt.s32.totalorder %s26, 0
        %s311 = scalar_select %p310, %s26, 0
        %s312 = scalar_lea.vmem %s2, %s311
        %p313 = pneg %p108
        %p314 = pneg %p105
        %p315 = scmp.lt.s32.totalorder %s25, 1
        %s316 = scalar_select %p315, %s25, 1
        %p317 = scmp.lt.s32.totalorder %s26, 0
        %s318 = scalar_select %p317, %s26, 0
        %s319 = sadd.s32 %s318, %s316
        %s320 = scalar_lea.vmem %s3, %s319
        %p321 = pneg %p136
        %p322 = pneg %p133
        %p323 = scmp.lt.s32.totalorder %s25, 1
        %s324 = scalar_select %p323, %s25, 1
        %p325 = scmp.lt.s32.totalorder %s26, 0
        %s326 = scalar_select %p325, %s26, 0
        %s327 = smul.addr %s324, 3
        %s328 = sadd.s32 %s326, %s327
        %s329 = scalar_lea.vmem %s4, %s328
        %p330 = pneg %p164
        %p331 = pneg %p161
        %p332 = pneg %p185
        %p333 = pneg %p182
        %p334 = pneg %p213
        %p335 = pneg %p210
        %s336 = sand.u32 %s200, 1
        %s337 = scalar_lea.sflag [#allocation3], %s336
        %s338 = sand.u32 %s200, 1
        %s339 = scalar_lea.vmem [#allocation5], %s338
        %p340 = scmp.lt.s32.totalorder %s25, 1
        %s341 = scalar_select %p340, %s25, 1
        %s342 = smul.addr %s341, 4
        %s343 = scalar_lea.vmem %s0, %s342
        %p344 = scmp.lt.s32.totalorder %s25, 1
        %s345 = scalar_select %p344, %s25, 1
        %p346 = scmp.lt.s32.totalorder %s26, 0
        %s347 = scalar_select %p346, %s26, 0
        %s348 = sadd.s32 %s347, %s345
        %s349 = scalar_lea.vmem %s1, %s348
        %p350 = scmp.lt.s32.totalorder %s26, 0
        %s351 = scalar_select %p350, %s26, 0
        %s352 = scalar_lea.vmem %s2, %s351
        %p353 = scmp.lt.s32.totalorder %s25, 1
        %s354 = scalar_select %p353, %s25, 1
        %p355 = scmp.lt.s32.totalorder %s26, 0
        %s356 = scalar_select %p355, %s26, 0
        %s357 = sadd.s32 %s356, %s354
        %s358 = scalar_lea.vmem %s3, %s357
        %p359 = scmp.lt.s32.totalorder %s25, 1
        %s360 = scalar_select %p359, %s25, 1
        %p361 = scmp.lt.s32.totalorder %s26, 0
        %s362 = scalar_select %p361, %s26, 0
        %s363 = smul.addr %s360, 3
        %s364 = sadd.s32 %s362, %s363
        %s365 = scalar_lea.vmem %s4, %s364
        %v366 = vld [vmem:[%s349] sm:$0x1]
        %v367 = vld [vmem:[%s352] sm:$0x1]
        %v368 = vlaneseq
        %v369 = vshrl.u32 %v368, 7
        %v370 = vperm.slane %v366, 0
        %vm371 = vcmp.eq.s32.totalorder %v369, %v370
        %v372 = vsel %vm371, 1, 0
        %v373 = vcvt.s32.f32 %v372
        %v374 = vperm.slane %v367, 0
        %vm375 = vcmp.eq.s32.totalorder %v369, %v374
        %v376 = vsel %vm375, 1, 0
        %v377 = vcvt.s32.f32 %v376
        %v378 = vsub.f32 %v373, %v377
        %v379 = vld [vmem:[%s343] sm:$0x7]
        %vm380 = vcmask 64512
        %v382 = vsel %vm380, %v379, 0
        %384 = vmatpush.msra.mxu0 0.0
        %385 = vmatpush.msra.mxu0 0.0
        %386 = vmatpush.msra.mxu0 0.0
        %387 = vmatpush.msra.mxu0 0.0
        %388 = vmatpush.msra.mxu0 0.0
        %389 = vmatpush.msra.mxu0 0.0
        %390 = vmatpush.msra.mxu0 0.0
        %391 = vmatpush.msra.mxu0 0.0
        %392 = vmatpush.msra.mxu0 0.0
        %393 = vmatpush.msra.mxu0 0.0
        %394 = vmatpush.msra.mxu0 0.0
        %395 = vmatpush.msra.mxu0 0.0
        %396 = vmatpush.msra.mxu0 0.0
        %397 = vmatpush.msra.mxu0 0.0
        %398 = vmatpush.msra.mxu0 0.0
        %399 = vmatpush.msra.mxu0 %v378
        %400 = vmatmul.f32.gmra.mxu0 %v382
        %v401 = vpop.f32.mrf.mxu0
        %v402 = vadd.f32 0.0, %v401
        %403 = vdwg.mxu0
        %v404 = vld [vmem:[%s365] sm:$0x1]
        %v405 = vld [vmem:[%s365 + $0x1] sm:$0x1]
        %v406 = vld [vmem:[%s365 + $0x2] sm:$0x1]
        %s407 = smul.u32 %s25, 128
        %s408 = sld [smem:[#allocation2 + %s407]]
        %s409 = sadd.s32 %s407, 1
        %s410 = sld [smem:[#allocation2 + %s409]]
        %s411 = sadd.s32 %s407, 2
        %s412 = sld [smem:[#allocation2 + %s411]]
        %s413 = sadd.s32 %s407, 3
        %s414 = sld [smem:[#allocation2 + %s413]]
        %s415 = sadd.s32 %s407, 4
        %s416 = sld [smem:[#allocation2 + %s415]]
        %s417 = sadd.s32 %s407, 5
        %s418 = sld [smem:[#allocation2 + %s417]]
        %s419 = sadd.s32 %s407, 6
        %s420 = sld [smem:[#allocation2 + %s419]]
        %s421 = sadd.s32 %s407, 7
        %s422 = sld [smem:[#allocation2 + %s421]]
        %s423 = sadd.s32 %s407, 8
        %s424 = sld [smem:[#allocation2 + %s423]]
        %v425 = vstv %s408
        %v426 = vmul.f32 %v404, %v425
        %v427 = vadd.f32 %v402, %v426
        %v428 = vstv %s414
        %v429 = vmul.f32 %v405, %v428
        %v430 = vadd.f32 %v427, %v429
        %v431 = vstv %s420
        %v432 = vmul.f32 %v406, %v431
        %v433 = vadd.f32 %v430, %v432
        %v434 = vstv %s410
        %v435 = vmul.f32 %v404, %v434
        %v437 = vperm.slane %v435, 0
        %v439 = vadd.f32 %v402, %v437
        %v440 = vstv %s416
        %v441 = vmul.f32 %v405, %v440
        %v443 = vperm.slane %v441, 0
        %v445 = vadd.f32 %v439, %v443
        %v446 = vstv %s422
        %v447 = vmul.f32 %v406, %v446
        %v449 = vperm.slane %v447, 0
        %v451 = vadd.f32 %v445, %v449
        %v452 = vstv %s412
        %v453 = vmul.f32 %v404, %v452
        %v455 = vperm.slane %v453, 0
        %v457 = vadd.f32 %v402, %v455
        %v458 = vstv %s418
        %v459 = vmul.f32 %v405, %v458
        %v461 = vperm.slane %v459, 0
        %v463 = vadd.f32 %v457, %v461
        %v464 = vstv %s424
        %v465 = vmul.f32 %v406, %v464
        %v467 = vperm.slane %v465, 0
        %v469 = vadd.f32 %v463, %v467
        %v470 = vmul.f32 %v433, %v433
        %v471 = vmul.f32 %v451, %v451
        %v473 = vrot.slane %v471, 1
        %v475 = vadd.f32 %v470, %v473
        %v476 = vmul.f32 %v469, %v469
        %v478 = vrot.slane %v476, 2
        %v480 = vadd.f32 %v475, %v478
        %v481 = vrsqrt.pop %v480
        %v482 = vmul.f32 %v481, %v480
        %v483 = vmul.f32 %v482, %v481
        %v484 = vmul.f32 0.5, %v483
        %v485 = vsub.f32 1.5, %v484
        %v486 = vmul.f32 %v481, %v485
        %v487 = vmul.f32 %v480, %v486
        %vm488 = vcmp.eq.f32.partialorder %v480, inf
        %v489 = vsel %vm488, %v480, %v487
        %vm490 = vcmp.eq.f32.partialorder %v480, 0.0
        %v491 = vand.u32 %v480, 2147483648
        %v492 = vsel %vm490, %v491, %v489
        %v493 = vld [vmem:[%s358] sm:$0x1]
        %vm494 = vcmp.ne.f32.partialorder %v493, 0.0
        %v495 = vsel %vm494, %v492, 0.0
        %vm496 = vcmask 516096
        %497 = vst.msk [vmem:[%s339] sm:$0x1] %vm496, %v495
        %s498 = sand.u32 %s200, 1
        %s499 = scalar_lea.sflag [#allocation3], %s498
        %s500 = sand.u32 %s200, 1
        %s501 = scalar_lea.vmem [#allocation5], %s500
        // Predicated region
        $region49: #{tpu_custom_call.1} parent=43 // pred_check
          %p502 = pneg %p210
        $region50: #{tpu_custom_call.1} parent=43 // pred_check_branch
          %504 = sbr.rel (%p502) target = $region52
        $region51: #{tpu_custom_call.1} parent=43 // pred_region
          %506 = vsyncadd %s499, 0
          %s507 = sadd.s32 %s26, %s25
          %s508 = scalar_lea.hbm %s6, %s507
          %s510 = sshll.u32 %s501, 4
          %s511 = int_to_ptr.vmem [resolvable:$true] %s510
          %s512 = sshll.u32 %s508, 4
          %s513 = int_to_ptr.hbm [resolvable:$true] %s512
          %515 = dma.vmem_to_hbm [thread:$0]  %s511, 16, %s513, %s499
        $region52: #{tpu_custom_call.1} parent=43 // pred_fallthru
          _
      $region44: #{tpu_custom_call.1} parent=5 // pred_fallthru
        _
      %p516 = scmp.le.s32.totalorder 2, %s16
      // Predicated region
      $region53: #{tpu_custom_call.1} parent=5 // pred_check
        %p517 = pneg %p516
      $region54: #{tpu_custom_call.1} parent=5 // pred_check_branch
        %519 = sbr.rel (%p517) target = $region56
      $region55: #{tpu_custom_call.1} parent=5 // pred_region
        %s520 = ssub.s32 %s16, 2
        // Predicated region
        $region57: #{tpu_custom_call.1} parent=55 // pred_check
          %p521 = pneg %p216
        $region58: #{tpu_custom_call.1} parent=55 // pred_check_branch
          %523 = sbr.rel (%p521) target = $region60
        $region59: #{tpu_custom_call.1} parent=55 // pred_region
          %s524 = sand.u32 %s201, 1
          %s525 = scalar_lea.sflag [#allocation3], %s524
          %s526 = sand.u32 %s201, 1
          %s527 = scalar_lea.vmem [#allocation5], %s526
          %529 = dma.done %s525, 16
        $region60: #{tpu_custom_call.1} parent=55 // pred_fallthru
          _
      $region56: #{tpu_custom_call.1} parent=5 // pred_fallthru
        _
    $region6: #{tpu_custom_call.1} parent=1 // loop_footer
      %s20 = sadd.s32 1, %s16
    $region7: #{tpu_custom_call.1} parent=1 // loop_footer_branch
      %15 = sbr.rel target = $region3
    $region8: #{tpu_custom_call.1} parent=1 // loop_exit
      _
    %530 = vsyncpa [#allocation3], 1
    %s531 = scalar_lea.sflag [#allocation3], 1
    %532 = vsyncpa %s531, 1
    %533 = vsyncpa [#allocation4], 1
    %s534 = scalar_lea.sflag [#allocation4], 1
    %535 = vsyncpa %s534, 1

</llo_original>
